<compile_context>
chip_gen: v7x
topology: tpu7x:2x2x1
jax: 0.10.0
libtpu: 0.0.40
codegen_flags: <defaults>
</compile_context>

<pallas_src>
import functools

import numpy as np
import jax
import jax.numpy as jnp
from jax.experimental import pallas as pl
from jax.experimental.pallas import tpu as pltpu


def _round_up(v, m):
    return ((v + m - 1) // m) * m


def _pick_tile_b(batch, max_tile):
    """Pick a batch tile: multiple of 8, divides the padded batch (no waste),
    as large as possible up to max_tile, with >= 2 grid steps when possible."""
    b8 = _round_up(max(batch, 1), 8)
    cap = max(8, min(_round_up(max_tile, 8), b8))
    tb = 8
    for cand in range(8, cap + 1, 8):          # largest mult-of-8 divisor <= cap
        if b8 % cand == 0:
            tb = cand
    # v7x: make sure the "parallel" batch axis has >= 2 steps so both
    # TensorCores get work (v5e/v6e: harmless).
    if tb == b8 and b8 >= 16:
        tb = max(8, (b8 // 2) // 8 * 8)
        while b8 % tb != 0:
            tb -= 8
    return tb, _round_up(b8, tb)


def _vmem_limit_bytes(tb, d_in_p, h_p, d_out_p, out_itemsize):
    stream = 2 * tb * (d_in_p * 4 + d_out_p * out_itemsize)   # double-buffered x + out tiles
    weights = 2 * ((d_in_p * h_p + h_p * d_out_p) * 2 + (h_p + d_out_p) * 4)
    temps = tb * (h_p + d_out_p) * 4                          # in-kernel f32 intermediates
    total = stream + weights + temps
    return int(min(max(2 * total, 16 * 1024 * 1024), 64 * 1024 * 1024))


def _t_kernel(x_ref, w1_ref, b1_ref, w2_ref, b2_ref, o_ref, *, add_residual):
    # x streams in f32 (keeps residual precision); cast to bf16 only for the MXU.
    x = x_ref[...]
    h = jnp.dot(x.astype(jnp.bfloat16), w1_ref[...],
                preferred_element_type=jnp.float32)
    h = jnp.maximum(h + b1_ref[...], 0.0)                      # f32 elementwise
    tr = jnp.dot(h.astype(jnp.bfloat16), w2_ref[...],
                 preferred_element_type=jnp.float32)
    tr = tr + b2_ref[...]
    if add_residual:
        # Residual = x[:, :latent_dim]. o_ref has d_out_p (= latent_dim padded
        # to 128) columns; columns >= latent_dim are sliced off by the caller,
        # so adding whatever sits in x's padded tail there is harmless.
        tr = tr + x[:, : o_ref.shape[1]]
    o_ref[...] = tr.astype(o_ref.dtype)


def prepare_t_params(w1, b1, w2, b2):
    """Pad/cast the weights once — hoisted out of the per-call hot path."""
    w1 = jnp.asarray(w1, jnp.float32)
    w2 = jnp.asarray(w2, jnp.float32)
    b1 = jnp.asarray(b1, jnp.float32).reshape(1, -1)   # accept (N,) or (1, N)
    b2 = jnp.asarray(b2, jnp.float32).reshape(1, -1)
    d_in, hidden = w1.shape
    d_out = w2.shape[1]
    d_in_p, h_p, d_out_p = (_round_up(d, 128) for d in (d_in, hidden, d_out))
    pad2 = lambda a, r, c: jnp.pad(a, ((0, r - a.shape[0]), (0, c - a.shape[1])))
    return dict(
        w1=pad2(w1, d_in_p, h_p).astype(jnp.bfloat16),
        b1=pad2(b1, 1, h_p),
        w2=pad2(w2, h_p, d_out_p).astype(jnp.bfloat16),
        b2=pad2(b2, 1, d_out_p),
        d_in=d_in, hidden=hidden, d_out=d_out,
        d_in_p=d_in_p, h_p=h_p, d_out_p=d_out_p,
    )


def t_forward(x, params, *, latent_dim, predict_z=True, encode_new_state=False,
              out_dtype=jnp.float32, tile_b=1024):
    """Forward of `T`: Linear -> ReLU -> Linear, plus residual add by default."""
    x = jnp.asarray(x, jnp.float32)
    B, d_in = x.shape
    assert d_in == params["d_in"], "x feature dim must match W1 in_features"
    d_out = params["d_out"]
    d_in_p, h_p, d_out_p = params["d_in_p"], params["h_p"], params["d_out_p"]

    add_residual = bool(predict_z and not encode_new_state)
    if add_residual:
        # Module invariant: predict_z=True => output_shape == latent_dim <= d_in.
        assert latent_dim == d_out and latent_dim <= d_in

    tb, b_p = _pick_tile_b(B, tile_b)

    # Single activation pad (f32). bf16 cast happens in-kernel, so x is read
    # from HBM exactly once and the residual keeps full f32 precision.
    if (b_p, d_in_p) != (B, d_in):
        x_p = jnp.pad(x, ((0, b_p - B), (0, d_in_p - d_in)))
    else:
        x_p = x

    out_itemsize = np.dtype(out_dtype).itemsize
    kernel = functools.partial(_t_kernel, add_residual=add_residual)

    out_p = pl.pallas_call(
        kernel,
        out_shape=jax.ShapeDtypeStruct((b_p, d_out_p), out_dtype),
        grid_spec=pltpu.PrefetchScalarGridSpec(
            num_scalar_prefetch=0,
            grid=(b_p // tb,),
            in_specs=[
                pl.BlockSpec((tb, d_in_p), lambda i: (i, 0)),     # activations stream
                pl.BlockSpec((d_in_p, h_p), lambda i: (0, 0)),    # W1 resident
                pl.BlockSpec((1, h_p), lambda i: (0, 0)),         # b1 resident
                pl.BlockSpec((h_p, d_out_p), lambda i: (0, 0)),   # W2 resident
                pl.BlockSpec((1, d_out_p), lambda i: (0, 0)),     # b2 resident
            ],
            out_specs=pl.BlockSpec((tb, d_out_p), lambda i: (i, 0)),
        ),
        compiler_params=pltpu.CompilerParams(
            dimension_semantics=("parallel",),   # batch axis shards over v7x's 2 TCs
            vmem_limit_bytes=_vmem_limit_bytes(tb, d_in_p, h_p, d_out_p, out_itemsize),
        ),
    )(x_p, params["w1"], params["b1"], params["w2"], params["b2"])

    if (b_p, d_out_p) != (B, d_out):
        return out_p[:B, :d_out]
    return out_p


def _torch_linear_init(key, fan_in, fan_out):
    # Deterministic stand-in for torch.nn.Linear init: U(-1/sqrt(fan_in), +1/sqrt(fan_in))
    kw, kb = jax.random.split(key)
    bound = 1.0 / jnp.sqrt(jnp.float32(fan_in))
    w = jax.random.uniform(kw, (fan_in, fan_out), jnp.float32, -bound, bound)
    b = jax.random.uniform(kb, (1, fan_out), jnp.float32, -bound, bound)
    return w, b


if __name__ == "__main__":
    # Small shapes consistent with the module: x has latent_dim + n_actions features.
    BATCH, LATENT_DIM, N_ACTIONS, HIDDEN = 4, 32, 16, 64
    D_IN = LATENT_DIM + N_ACTIONS          # 48
    D_OUT = LATENT_DIM                     # predict_z=True -> output_shape = latent_dim

    key = jax.random.PRNGKey(0)
    kx, k1, k2 = jax.random.split(key, 3)
    x = jax.random.normal(kx, (BATCH, D_IN), jnp.float32)
    w1, b1 = _torch_linear_init(k1, D_IN, HIDDEN)
    w2, b2 = _torch_linear_init(k2, HIDDEN, D_OUT)

    # Weight pad/cast hoisted out of the hot path (done once).
    params = prepare_t_params(w1, b1, w2, b2)

    fwd = jax.jit(functools.partial(t_forward, params=params, latent_dim=LATENT_DIM))
    out = jax.block_until_ready(fwd(x))
    assert out.shape == (BATCH, D_OUT)

    # Reference matched to the kernel's precision (bf16 matmul inputs, f32 acc,
    # residual taken from f32 x).
    xb, w1b, w2b = (a.astype(jnp.bfloat16) for a in (x, w1, w2))
    h_ref = jnp.maximum(jnp.dot(xb, w1b, preferred_element_type=jnp.float32) + b1, 0.0)
    tr_ref = jnp.dot(h_ref.astype(jnp.bfloat16), w2b,
                     preferred_element_type=jnp.float32) + b2
    ref_bf16 = x[:, :LATENT_DIM] + tr_ref
    assert jnp.allclose(out, ref_bf16, atol=1e-3, rtol=1e-3)

    # Loose sanity check against the full-f32 module semantics.
    tr_f32 = jnp.maximum(x @ w1 + b1, 0.0) @ w2 + b2
    ref_f32 = x[:, :LATENT_DIM] + tr_f32
    assert jnp.allclose(out, ref_f32, atol=5e-2, rtol=5e-2)

    # No-residual variant (encode_new_state=True): forward returns fc(x) only.
    out_nr = jax.block_until_ready(
        t_forward(x, params, latent_dim=LATENT_DIM, encode_new_state=True))
    assert out_nr.shape == (BATCH, D_OUT)
    assert jnp.allclose(out_nr, tr_ref, atol=1e-3, rtol=1e-3)

    print("KERNEL_OK")
</pallas_src>

<mosaic_0001>
module attributes {stable_mosaic.version = 11 : i64} {
  func.func @_t_kernel(%arg0: i32, %arg1: memref<8x128xf32, #tpu.memory_space<vmem>>, %arg2: memref<128x128xbf16, #tpu.memory_space<vmem>>, %arg3: memref<1x128xf32, #tpu.memory_space<vmem>>, %arg4: memref<128x128xbf16, #tpu.memory_space<vmem>>, %arg5: memref<1x128xf32, #tpu.memory_space<vmem>>, %arg6: memref<8x128xf32, #tpu.memory_space<vmem>>) attributes {dimension_semantics = [#tpu.dimension_semantics<parallel>], iteration_bounds = array<i64: 1>, scalar_prefetch = 0 : i64, scratch_operands = 0 : i64, tpu.core_type = #tpu.core_type<tc>, window_params = [{transform_indices = @transform_0, window_bounds = array<i64: 8, 128>}, {pipeline_mode = #tpu.pipeline_mode<synchronous>, transform_indices = @transform_1, window_bounds = array<i64: 128, 128>}, {pipeline_mode = #tpu.pipeline_mode<synchronous>, transform_indices = @transform_2, window_bounds = array<i64: 1, 128>}, {pipeline_mode = #tpu.pipeline_mode<synchronous>, transform_indices = @transform_3, window_bounds = array<i64: 128, 128>}, {pipeline_mode = #tpu.pipeline_mode<synchronous>, transform_indices = @transform_4, window_bounds = array<i64: 1, 128>}, {transform_indices = @transform_5, window_bounds = array<i64: 8, 128>}]} {
    %c0 = arith.constant 0 : index
    %c0_0 = arith.constant 0 : index
    %0 = vector.load %arg1[%c0, %c0_0] : memref<8x128xf32, #tpu.memory_space<vmem>>, vector<8x128xf32>
    %1 = arith.truncf %0 : vector<8x128xf32> to vector<8x128xbf16>
    %c0_1 = arith.constant 0 : index
    %c0_2 = arith.constant 0 : index
    %2 = vector.load %arg2[%c0_1, %c0_2] : memref<128x128xbf16, #tpu.memory_space<vmem>>, vector<128x128xbf16>
    %cst = arith.constant dense<0.000000e+00> : vector<8x128xf32>
    %3 = tpu.matmul %1, %2, %cst {dimension_numbers = #tpu.dot_dimension_numbers<[1], [0], [0], [1], [0, 0, 1, 1], [], []>} : vector<8x128xbf16>, vector<128x128xbf16>, vector<8x128xf32> -> vector<8x128xf32>
    %c0_3 = arith.constant 0 : index
    %c0_4 = arith.constant 0 : index
    %4 = vector.load %arg3[%c0_3, %c0_4] : memref<1x128xf32, #tpu.memory_space<vmem>>, vector<1x128xf32>
    %5 = vector.broadcast %4 : vector<1x128xf32> to vector<8x128xf32>
    %6 = arith.addf %3, %5 : vector<8x128xf32>
    %cst_5 = arith.constant 0.000000e+00 : f32
    %7 = vector.broadcast %cst_5 : f32 to vector<8x128xf32>
    %8 = arith.maximumf %6, %7 : vector<8x128xf32>
    %9 = arith.truncf %8 : vector<8x128xf32> to vector<8x128xbf16>
    %c0_6 = arith.constant 0 : index
    %c0_7 = arith.constant 0 : index
    %10 = vector.load %arg4[%c0_6, %c0_7] : memref<128x128xbf16, #tpu.memory_space<vmem>>, vector<128x128xbf16>
    %cst_8 = arith.constant dense<0.000000e+00> : vector<8x128xf32>
    %11 = tpu.matmul %9, %10, %cst_8 {dimension_numbers = #tpu.dot_dimension_numbers<[1], [0], [0], [1], [0, 0, 1, 1], [], []>} : vector<8x128xbf16>, vector<128x128xbf16>, vector<8x128xf32> -> vector<8x128xf32>
    %c0_9 = arith.constant 0 : index
    %c0_10 = arith.constant 0 : index
    %12 = vector.load %arg5[%c0_9, %c0_10] : memref<1x128xf32, #tpu.memory_space<vmem>>, vector<1x128xf32>
    %13 = vector.broadcast %12 : vector<1x128xf32> to vector<8x128xf32>
    %14 = arith.addf %11, %13 : vector<8x128xf32>
    %15 = arith.addf %14, %0 : vector<8x128xf32>
    %c0_11 = arith.constant 0 : index
    %c0_12 = arith.constant 0 : index
    %16 = vector.load %arg6[%c0_11, %c0_12] : memref<8x128xf32, #tpu.memory_space<vmem>>, vector<8x128xf32>
    tpu.vector_store %arg6[%c0_11, %c0_12], %15 {strides = array<i32>} : memref<8x128xf32, #tpu.memory_space<vmem>>, vector<8x128xf32>,
    return
  }
  func.func @transform_0(%arg0: i32) -> (i32, i32) {
    %c0_i32 = arith.constant 0 : i32
    %c0_i32_0 = arith.constant 0 : i32
    return %arg0, %c0_i32 : i32, i32
  }
  func.func @transform_1(%arg0: i32) -> (i32, i32) {
    %c0_i32 = arith.constant 0 : i32
    %c0_i32_0 = arith.constant 0 : i32
    %c0_i32_1 = arith.constant 0 : i32
    return %c0_i32, %c0_i32_0 : i32, i32
  }
  func.func @transform_2(%arg0: i32) -> (i32, i32) {
    %c0_i32 = arith.constant 0 : i32
    %c0_i32_0 = arith.constant 0 : i32
    %c0_i32_1 = arith.constant 0 : i32
    return %c0_i32, %c0_i32_0 : i32, i32
  }
  func.func @transform_3(%arg0: i32) -> (i32, i32) {
    %c0_i32 = arith.constant 0 : i32
    %c0_i32_0 = arith.constant 0 : i32
    %c0_i32_1 = arith.constant 0 : i32
    return %c0_i32, %c0_i32_0 : i32, i32
  }
  func.func @transform_4(%arg0: i32) -> (i32, i32) {
    %c0_i32 = arith.constant 0 : i32
    %c0_i32_0 = arith.constant 0 : i32
    %c0_i32_1 = arith.constant 0 : i32
    return %c0_i32, %c0_i32_0 : i32, i32
  }
  func.func @transform_5(%arg0: i32) -> (i32, i32) {
    %c0_i32 = arith.constant 0 : i32
    %c0_i32_0 = arith.constant 0 : i32
    return %arg0, %c0_i32 : i32, i32
  }
}

</mosaic_0001>

<llo_original>
// kernel: t_forward.1
$region0: #{t_forward.1}
  #allocation0 [shape = 'u32[]', space=smem, size = 0x4, offset = 0x4, fixed_abs, tag = 'smem constant byte address 0x4 - core index']
  #allocation1 [shape = 'u32[144,128]{1,0:T(1,128)}', space=vmem, size = 0x12000, scoped, tag = 'internal scratch']
  %s0 = inlined_call_operand.vmem [shape: f32[8,128], index: 0, kind: input, shape index: {}]
  %s1 = inlined_call_operand.hbm [shape: bf16[128,128], index: 1, kind: input, shape index: {}]
  %s2 = inlined_call_operand.vmem [shape: f32[1,128], index: 2, kind: input, shape index: {}]
  %s3 = inlined_call_operand.hbm [shape: bf16[128,128], index: 3, kind: input, shape index: {}]
  %s4 = inlined_call_operand.vmem [shape: f32[1,128], index: 4, kind: input, shape index: {}]
  %s5 = inlined_call_operand.vmem [shape: f32[8,128], index: 5, kind: output, shape index: {}]
  %s6 = sld [smem:[#allocation0]]
  $region38: #{t_forward.1} parent=0
    _
  %s8 = ssub.s32 1, %s6
  %s9 = scalar_select 0, %s8, %s6
  $region1: #{t_forward.1} parent=0
    #allocation2 [shape = 'u8[32768]{0}', space=vmem, size = 0x8000, scoped, tag = 'input window, operand 1, single buffered']
    #allocation3 [shape = 's32[1]{0}', space=sflag, size = 0x4, scoped, tag = 'scoped memory for t_forward.1']
    #allocation4 [shape = 'u8[32768]{0}', space=vmem, size = 0x8000, scoped, tag = 'input window, operand 3, single buffered']
    #allocation5 [shape = 's32[1]{0}', space=sflag, size = 0x4, scoped, tag = 'scoped memory for t_forward.1']
    %10 = vsyncpa [#allocation3], 0
    %11 = vsyncpa [#allocation5], 0
    // Predicated region
    $region2: #{t_forward.1} parent=1 // pred_check
      _
    $region3: #{t_forward.1} parent=1 // pred_check_branch
      %13 = sbr.rel (0) target = $region5
    $region4: #{t_forward.1} parent=1 // pred_region
      _
    $region5: #{t_forward.1} parent=1 // pred_fallthru
      _
    // Predicated region
    $region6: #{t_forward.1} parent=1 // pred_check
      _
    $region7: #{t_forward.1} parent=1 // pred_check_branch
      %15 = sbr.rel (0) target = $region9
    $region8: #{t_forward.1} parent=1 // pred_region
      %s17 = ssub.s32 1024, 1024
      %18 = vsyncadd [#allocation3], %s17
      %s19 = sshll.u32 [#allocation2], 4
      %s20 = int_to_ptr.vmem [resolvable:$true] %s19
      %25 = dma.hbm_to_vmem [thread:$0]  %s1, 1024, %s20, [#allocation3], 64, 64, 4
    $region9: #{t_forward.1} parent=1 // pred_fallthru
      _
    // Predicated region
    $region10: #{t_forward.1} parent=1 // pred_check
      _
    $region11: #{t_forward.1} parent=1 // pred_check_branch
      %27 = sbr.rel (0) target = $region13
    $region12: #{t_forward.1} parent=1 // pred_region
      _
    $region13: #{t_forward.1} parent=1 // pred_fallthru
      _
    // Predicated region
    $region14: #{t_forward.1} parent=1 // pred_check
      _
    $region15: #{t_forward.1} parent=1 // pred_check_branch
      %29 = sbr.rel (0) target = $region17
    $region16: #{t_forward.1} parent=1 // pred_region
      %s31 = ssub.s32 1024, 1024
      %32 = vsyncadd [#allocation5], %s31
      %s33 = sshll.u32 [#allocation4], 4
      %s34 = int_to_ptr.vmem [resolvable:$true] %s33
      %39 = dma.hbm_to_vmem [thread:$0]  %s3, 1024, %s34, [#allocation5], 64, 64, 4
    $region17: #{t_forward.1} parent=1 // pred_fallthru
      _
    // Predicated region
    $region18: #{t_forward.1} parent=1 // pred_check
      _
    $region19: #{t_forward.1} parent=1 // pred_check_branch
      %41 = sbr.rel (0) target = $region21
    $region20: #{t_forward.1} parent=1 // pred_region
      _
    $region21: #{t_forward.1} parent=1 // pred_fallthru
      _
    // Predicated region
    $region22: #{t_forward.1} parent=1 // pred_check
      _
    $region23: #{t_forward.1} parent=1 // pred_check_branch
      %43 = sbr.rel (0) target = $region25
    $region24: #{t_forward.1} parent=1 // pred_region
      %44 = dma.done [#allocation3], 1024
    $region25: #{t_forward.1} parent=1 // pred_fallthru
      _
    // Predicated region
    $region26: #{t_forward.1} parent=1 // pred_check
      _
    $region27: #{t_forward.1} parent=1 // pred_check_branch
      %46 = sbr.rel (0) target = $region29
    $region28: #{t_forward.1} parent=1 // pred_region
      %47 = dma.done [#allocation5], 1024
    $region29: #{t_forward.1} parent=1 // pred_fallthru
      _
    %v49 = vld [vmem:[%s0] sm:$0xff]
    %v50 = vpack.c.bf16 %v49, %v49
    %v51 = vld [vmem:[#allocation2] sm:$0xf]
    %v52 = vld [vmem:[#allocation2 + $0x4] sm:$0xf]
    %v53 = vld [vmem:[#allocation2 + $0x8] sm:$0xf]
    %v54 = vld [vmem:[#allocation2 + $0xc] sm:$0xf]
    %v55 = vld [vmem:[#allocation2 + $0x10] sm:$0xf]
    %v56 = vld [vmem:[#allocation2 + $0x14] sm:$0xf]
    %v57 = vld [vmem:[#allocation2 + $0x18] sm:$0xf]
    %v58 = vld [vmem:[#allocation2 + $0x1c] sm:$0xf]
    %v59 = vld [vmem:[#allocation2 + $0x20] sm:$0xf]
    %v60 = vld [vmem:[#allocation2 + $0x24] sm:$0xf]
    %v61 = vld [vmem:[#allocation2 + $0x28] sm:$0xf]
    %v62 = vld [vmem:[#allocation2 + $0x2c] sm:$0xf]
    %v63 = vld [vmem:[#allocation2 + $0x30] sm:$0xf]
    %v64 = vld [vmem:[#allocation2 + $0x34] sm:$0xf]
    %v65 = vld [vmem:[#allocation2 + $0x38] sm:$0xf]
    %v66 = vld [vmem:[#allocation2 + $0x3c] sm:$0xf]
    %v67 = vld [vmem:[%s2] sm:$0x1]
    %v69 = vlaneseq
    %v70 = vshrl.u32 %v69, 7
    %v71 = vsub.s32 0, %v70
    %v72 = vrot.slane %v67, %v71
    %v90 = vunpack.c.l.b16 %v51
    %v91 = vunpack.c.l.b16 %v52
    %v92 = vunpack.c.l.b16 %v53
    %v93 = vunpack.c.l.b16 %v54
    %v94 = vunpack.c.l.b16 %v55
    %v95 = vunpack.c.l.b16 %v56
    %v96 = vunpack.c.l.b16 %v57
    %v97 = vunpack.c.l.b16 %v58
    %v98 = vunpack.c.l.b16 %v59
    %v99 = vunpack.c.l.b16 %v60
    %v100 = vunpack.c.l.b16 %v61
    %v101 = vunpack.c.l.b16 %v62
    %v102 = vunpack.c.l.b16 %v63
    %v103 = vunpack.c.l.b16 %v64
    %v104 = vunpack.c.l.b16 %v65
    %v105 = vunpack.c.l.b16 %v66
    %v106 = vpack.c.b16 %v91, %v90
    %v107 = vpack.c.b16 %v93, %v92
    %v108 = vpack.c.b16 %v95, %v94
    %v109 = vpack.c.b16 %v97, %v96
    %v110 = vpack.c.b16 %v99, %v98
    %v111 = vpack.c.b16 %v101, %v100
    %v112 = vpack.c.b16 %v103, %v102
    %v113 = vpack.c.b16 %v105, %v104
    %122 = vmatprep.subr.bf16.mxu0 0
    %123 = vmatpush1.bf16.msra.mxu0 %v106
    %124 = vmatprep.subr.bf16.mxu0 0
    %125 = vmatpush1.bf16.msra.mxu0 %v107
    %126 = vmatprep.subr.bf16.mxu0 0
    %127 = vmatpush1.bf16.msra.mxu0 %v108
    %128 = vmatprep.subr.bf16.mxu0 0
    %129 = vmatpush1.bf16.msra.mxu0 %v109
    %130 = vmatprep.subr.bf16.mxu0 0
    %131 = vmatpush1.bf16.msra.mxu0 %v110
    %132 = vmatprep.subr.bf16.mxu0 0
    %133 = vmatpush1.bf16.msra.mxu0 %v111
    %134 = vmatprep.subr.bf16.mxu0 0
    %135 = vmatpush1.bf16.msra.mxu0 %v112
    %136 = vmatprep.subr.bf16.mxu0 0
    %137 = vmatpush1.bf16.msra.mxu0 %v113
    %138 = vmatprep.subr.bf16.mxu0 0
    %139 = vmatpush1.bf16.msra.mxu0 0
    %140 = vmatprep.subr.bf16.mxu0 0
    %141 = vmatpush1.bf16.msra.mxu0 0
    %142 = vmatprep.subr.bf16.mxu0 0
    %143 = vmatpush1.bf16.msra.mxu0 0
    %144 = vmatprep.subr.bf16.mxu0 0
    %145 = vmatpush1.bf16.msra.mxu0 0
    %146 = vmatprep.subr.bf16.mxu0 0
    %147 = vmatpush1.bf16.msra.mxu0 0
    %148 = vmatprep.subr.bf16.mxu0 0
    %149 = vmatpush1.bf16.msra.mxu0 0
    %150 = vmatprep.subr.bf16.mxu0 0
    %151 = vmatpush1.bf16.msra.mxu0 0
    %152 = vmatprep.subr.bf16.mxu0 0
    %153 = vmatpush1.bf16.msra.mxu0 0
    %154 = vmatprep.mubr.bf16.mxu0 0
    %155 = vmatmul.mubr.bf16.gmra.mrb[0].mxu0 %v50
    %v156 = vpop.f32.mrb[0].mxu0
    %v157 = vadd.f32 %v72, %v156
    %v158 = vpop.f32.mrb[0].mxu0
    %v159 = vpop.f32.mrb[0].mxu0
    %v160 = vpop.f32.mrb[0].mxu0
    %161 = vdwg.mxu0
    %v162 = vmax.f32 %v157, 0.0
    %v163 = vpack.c.bf16 %v162, %v162
    %v164 = vld [vmem:[#allocation4] sm:$0xf]
    %v165 = vld [vmem:[#allocation4 + $0x4] sm:$0xf]
    %v166 = vld [vmem:[#allocation4 + $0x8] sm:$0xf]
    %v167 = vld [vmem:[#allocation4 + $0xc] sm:$0xf]
    %v168 = vld [vmem:[#allocation4 + $0x10] sm:$0xf]
    %v169 = vld [vmem:[#allocation4 + $0x14] sm:$0xf]
    %v170 = vld [vmem:[#allocation4 + $0x18] sm:$0xf]
    %v171 = vld [vmem:[#allocation4 + $0x1c] sm:$0xf]
    %v172 = vld [vmem:[#allocation4 + $0x20] sm:$0xf]
    %v173 = vld [vmem:[#allocation4 + $0x24] sm:$0xf]
    %v174 = vld [vmem:[#allocation4 + $0x28] sm:$0xf]
    %v175 = vld [vmem:[#allocation4 + $0x2c] sm:$0xf]
    %v176 = vld [vmem:[#allocation4 + $0x30] sm:$0xf]
    %v177 = vld [vmem:[#allocation4 + $0x34] sm:$0xf]
    %v178 = vld [vmem:[#allocation4 + $0x38] sm:$0xf]
    %v179 = vld [vmem:[#allocation4 + $0x3c] sm:$0xf]
    %v180 = vld [vmem:[%s4] sm:$0x1]
    %v182 = vlaneseq
    %v183 = vshrl.u32 %v182, 7
    %v184 = vsub.s32 0, %v183
    %v185 = vrot.slane %v180, %v184
    %v203 = vunpack.c.l.b16 %v164
    %v204 = vunpack.c.l.b16 %v165
    %v205 = vunpack.c.l.b16 %v166
    %v206 = vunpack.c.l.b16 %v167
    %v207 = vunpack.c.l.b16 %v168
    %v208 = vunpack.c.l.b16 %v169
    %v209 = vunpack.c.l.b16 %v170
    %v210 = vunpack.c.l.b16 %v171
    %v211 = vunpack.c.l.b16 %v172
    %v212 = vunpack.c.l.b16 %v173
    %v213 = vunpack.c.l.b16 %v174
    %v214 = vunpack.c.l.b16 %v175
    %v215 = vunpack.c.l.b16 %v176
    %v216 = vunpack.c.l.b16 %v177
    %v217 = vunpack.c.l.b16 %v178
    %v218 = vunpack.c.l.b16 %v179
    %v219 = vpack.c.b16 %v204, %v203
    %v220 = vpack.c.b16 %v206, %v205
    %v221 = vpack.c.b16 %v208, %v207
    %v222 = vpack.c.b16 %v210, %v209
    %v223 = vpack.c.b16 %v212, %v211
    %v224 = vpack.c.b16 %v214, %v213
    %v225 = vpack.c.b16 %v216, %v215
    %v226 = vpack.c.b16 %v218, %v217
    %235 = vmatprep.subr.bf16.mxu0 0
    %236 = vmatpush1.bf16.msra.mxu0 %v219
    %237 = vmatprep.subr.bf16.mxu0 0
    %238 = vmatpush1.bf16.msra.mxu0 %v220
    %239 = vmatprep.subr.bf16.mxu0 0
    %240 = vmatpush1.bf16.msra.mxu0 %v221
    %241 = vmatprep.subr.bf16.mxu0 0
    %242 = vmatpush1.bf16.msra.mxu0 %v222
    %243 = vmatprep.subr.bf16.mxu0 0
    %244 = vmatpush1.bf16.msra.mxu0 %v223
    %245 = vmatprep.subr.bf16.mxu0 0
    %246 = vmatpush1.bf16.msra.mxu0 %v224
    %247 = vmatprep.subr.bf16.mxu0 0
    %248 = vmatpush1.bf16.msra.mxu0 %v225
    %249 = vmatprep.subr.bf16.mxu0 0
    %250 = vmatpush1.bf16.msra.mxu0 %v226
    %251 = vmatprep.subr.bf16.mxu0 0
    %252 = vmatpush1.bf16.msra.mxu0 0
    %253 = vmatprep.subr.bf16.mxu0 0
    %254 = vmatpush1.bf16.msra.mxu0 0
    %255 = vmatprep.subr.bf16.mxu0 0
    %256 = vmatpush1.bf16.msra.mxu0 0
    %257 = vmatprep.subr.bf16.mxu0 0
    %258 = vmatpush1.bf16.msra.mxu0 0
    %259 = vmatprep.subr.bf16.mxu0 0
    %260 = vmatpush1.bf16.msra.mxu0 0
    %261 = vmatprep.subr.bf16.mxu0 0
    %262 = vmatpush1.bf16.msra.mxu0 0
    %263 = vmatprep.subr.bf16.mxu0 0
    %264 = vmatpush1.bf16.msra.mxu0 0
    %265 = vmatprep.subr.bf16.mxu0 0
    %266 = vmatpush1.bf16.msra.mxu0 0
    %267 = vmatprep.mubr.bf16.mxu0 0
    %268 = vmatmul.mubr.bf16.gmra.mrb[0].mxu0 %v163
    %v269 = vpop.f32.mrb[0].mxu0
    %v270 = vadd.f32 %v185, %v269
    %v271 = vpop.f32.mrb[0].mxu0
    %v272 = vpop.f32.mrb[0].mxu0
    %v273 = vpop.f32.mrb[0].mxu0
    %274 = vdwg.mxu0
    %v275 = vadd.f32 %v270, %v49
    %276 = vst [vmem:[%s5] sm:$0xff] %v275
    // Predicated region
    $region30: #{t_forward.1} parent=1 // pred_check
      _
    $region31: #{t_forward.1} parent=1 // pred_check_branch
      %278 = sbr.rel (0) target = $region33
    $region32: #{t_forward.1} parent=1 // pred_region
      _
    $region33: #{t_forward.1} parent=1 // pred_fallthru
      _
    // Predicated region
    $region34: #{t_forward.1} parent=1 // pred_check
      _
    $region35: #{t_forward.1} parent=1 // pred_check_branch
      %280 = sbr.rel (0) target = $region37
    $region36: #{t_forward.1} parent=1 // pred_region
      _
    $region37: #{t_forward.1} parent=1 // pred_fallthru
      _
    %281 = vsyncpa [#allocation3], 1
    %282 = vsyncpa [#allocation5], 1

</llo_original>
